<compile_context>
chip_gen: v7x
topology: tpu7x:2x2x1
jax: 0.10.0
libtpu: 0.0.40
codegen_flags: <defaults>
</compile_context>

<pallas_src>
import functools

import jax
import jax.numpy as jnp
from jax.experimental import pallas as pl
from jax.experimental.pallas import tpu as pltpu


def _round_up(x, m):
    return ((x + m - 1) // m) * m


_SUBLANE = 16   # bf16 second-minor tile
_LANE = 128     # lane width


def dqn_kernel(x_ref,
               w1_ref, b1_ref,
               w2_ref, b2_ref,
               w3_ref, b3_ref,
               w4_ref, b4_ref,
               o_ref):
    """One batch tile of the full DQN forward, all operands in VMEM.

    x_ref: [TB, IN_P] bf16; w*: bf16 [in, out]; b*: f32 [1, out].
    Matmuls accumulate in f32 on the MXU; activations are re-cast to bf16
    between layers so every MXU push uses native bf16 operands.
    """
    h = jnp.dot(x_ref[...], w1_ref[...],
                preferred_element_type=jnp.float32) + b1_ref[...]
    h = jnp.maximum(h, 0.0).astype(jnp.bfloat16)

    h = jnp.dot(h, w2_ref[...],
                preferred_element_type=jnp.float32) + b2_ref[...]
    h = jnp.maximum(h, 0.0).astype(jnp.bfloat16)

    h = jnp.dot(h, w3_ref[...],
                preferred_element_type=jnp.float32) + b3_ref[...]
    h = jnp.maximum(h, 0.0).astype(jnp.bfloat16)

    h = jnp.dot(h, w4_ref[...],
                preferred_element_type=jnp.float32) + b4_ref[...]

    o_ref[...] = h.astype(o_ref.dtype)


def init_params(key, input_size, output_size):
    """Logical (unpadded) f32 params, PyTorch-Linear-like uniform init.

    Weights are stored [in_features, out_features]; biases [out_features].
    """
    dims = [(input_size, 128), (128, 256), (256, 128), (128, output_size)]
    params = []
    for fan_in, fan_out in dims:
        kw, kb, key = jax.random.split(key, 3)
        bound = 1.0 / jnp.sqrt(jnp.float32(fan_in))
        w = jax.random.uniform(kw, (fan_in, fan_out), jnp.float32, -bound, bound)
        b = jax.random.uniform(kb, (fan_out,), jnp.float32, -bound, bound)
        params.extend([w, b])
    return tuple(params)


def pack_params(params, input_size, output_size):
    """Pad to lane-aligned shapes and cast weights to bf16 (biases stay f32)."""
    w1, b1, w2, b2, w3, b3, w4, b4 = params
    in_p = _round_up(input_size, _LANE)
    out_p = _round_up(output_size, _LANE)

    def pad_w(w, rp, cp):
        r, c = w.shape
        return jnp.pad(w.astype(jnp.bfloat16), ((0, rp - r), (0, cp - c)))

    def pad_b(b, cp):
        c = b.shape[-1]
        return jnp.pad(b.reshape(1, c).astype(jnp.float32), ((0, 0), (0, cp - c)))

    return (pad_w(w1, in_p, 128), pad_b(b1, 128),
            pad_w(w2, 128, 256), pad_b(b2, 256),
            pad_w(w3, 256, 128), pad_b(b3, 128),
            pad_w(w4, 128, out_p), pad_b(b4, out_p))


def _choose_batch_tiling(B, batch_tile):
    """Pick (tile, padded_batch).

    * Small B: pad only to the bf16 sublane tile (16), single grid step.
    * Medium B: split into 2 equal multiple-of-16 tiles so the 'parallel'
      grid axis can shard across both TensorCores on v7x.
    * Large B: use `batch_tile` (multiple of 16) and pad B up to it.
    """
    assert batch_tile % _SUBLANE == 0, "batch_tile must be a multiple of 16"
    b_pad = max(_SUBLANE, _round_up(B, _SUBLANE))
    if b_pad > batch_tile:
        tb = batch_tile
        b_pad = _round_up(b_pad, tb)
    elif b_pad >= 2 * _SUBLANE:
        b_pad = _round_up(b_pad, 2 * _SUBLANE)
        tb = b_pad // 2
    else:
        tb = b_pad
    return tb, b_pad


@functools.partial(jax.jit, static_argnames=("output_size", "batch_tile"))
def dqn_forward(x, packed_params, output_size, batch_tile=512):
    """x: [B, input_size] f32. Returns [B, output_size] f32."""
    w1, b1, w2, b2, w3, b3, w4, b4 = packed_params
    B, in_dim = x.shape
    in_p = w1.shape[0]
    out_p = w4.shape[1]

    tb, b_pad = _choose_batch_tiling(B, batch_tile)

    # Single cheap padding pass on the bf16 copy (skipped if already aligned).
    # Zero-padded rows/cols are sliced away afterwards; zero weight rows/cols
    # keep the logical result exact.
    x_bf = x.astype(jnp.bfloat16)
    if b_pad != B or in_p != in_dim:
        x_bf = jnp.pad(x_bf, ((0, b_pad - B), (0, in_p - in_dim)))

    grid = (b_pad // tb,)

    flops = 2 * b_pad * (in_p * 128 + 128 * 256 + 256 * 128 + 128 * out_p)
    bytes_accessed = (b_pad * in_p * 2
                      + sum(int(w.size) * 2 for w in (w1, w2, w3, w4))
                      + sum(int(b.size) * 4 for b in (b1, b2, b3, b4))
                      + b_pad * out_p * 2)

    # Scoped-VMEM estimate: double-buffered x/out tiles, resident weights
    # (counted double-buffered to be safe), f32 intermediates. Only raise the
    # limit if we'd exceed v5e's 16 MiB default (only for very large tiles).
    vmem_est = (2 * tb * in_p * 2 + 2 * tb * out_p * 2
                + 2 * sum(int(w.size) * 2 for w in (w1, w2, w3, w4))
                + 2 * sum(int(b.size) * 4 for b in (b1, b2, b3, b4))
                + 4 * tb * 256 * 4)
    vmem_limit = int(vmem_est * 1.5) if vmem_est > 12 * 1024 * 1024 else None

    def resident(shape):
        # Full-array block, same index every grid step -> stays in VMEM,
        # no re-DMA per batch tile.
        return pl.BlockSpec(shape, lambda i: (0, 0))

    out_padded = pl.pallas_call(
        dqn_kernel,
        out_shape=jax.ShapeDtypeStruct((b_pad, out_p), jnp.bfloat16),
        grid_spec=pltpu.PrefetchScalarGridSpec(
            num_scalar_prefetch=0,
            grid=grid,
            in_specs=[
                pl.BlockSpec((tb, in_p), lambda i: (i, 0)),
                resident(w1.shape), resident(b1.shape),
                resident(w2.shape), resident(b2.shape),
                resident(w3.shape), resident(b3.shape),
                resident(w4.shape), resident(b4.shape),
            ],
            out_specs=pl.BlockSpec((tb, out_p), lambda i: (i, 0)),
        ),
        compiler_params=pltpu.CompilerParams(
            dimension_semantics=("parallel",),
            vmem_limit_bytes=vmem_limit),
        cost_estimate=pl.CostEstimate(
            flops=flops, transcendentals=0, bytes_accessed=bytes_accessed),
    )(x_bf, w1, b1, w2, b2, w3, b3, w4, b4)

    return out_padded[:B, :output_size].astype(jnp.float32)


def dqn_reference(x, params):
    """Pure-JAX f32 reference for correctness checking."""
    w1, b1, w2, b2, w3, b3, w4, b4 = params
    h = jnp.maximum(x @ w1 + b1, 0.0)
    h = jnp.maximum(h @ w2 + b2, 0.0)
    h = jnp.maximum(h @ w3 + b3, 0.0)
    return h @ w4 + b4


if __name__ == "__main__":
    key = jax.random.PRNGKey(0)
    kx, kx2, kp = jax.random.split(key, 3)

    input_size = 32
    output_size = 8

    params = init_params(kp, input_size, output_size)
    packed = pack_params(params, input_size, output_size)

    # Small inference-style batch: single 16-row tile, 1-step grid.
    batch = 8
    x = jax.random.normal(kx, (batch, input_size), dtype=jnp.float32)
    out = dqn_forward(x, packed, output_size)
    jax.block_until_ready(out)
    ref = dqn_reference(x, params)
    assert out.shape == (batch, output_size)
    # bf16 operands/output -> loosened tolerance (accumulation is still f32).
    assert jnp.allclose(out, ref, atol=5e-2, rtol=5e-2), "mismatch (small batch)"

    # Medium batch: padded to 64, split into two 32-row tiles (2-step
    # 'parallel' grid -> both TensorCores on v7x).
    batch2 = 40
    x2 = jax.random.normal(kx2, (batch2, input_size), dtype=jnp.float32)
    out2 = dqn_forward(x2, packed, output_size)
    jax.block_until_ready(out2)
    ref2 = dqn_reference(x2, params)
    assert out2.shape == (batch2, output_size)
    assert jnp.allclose(out2, ref2, atol=5e-2, rtol=5e-2), "mismatch (medium batch)"

    print("KERNEL_OK")
</pallas_src>

<mosaic_0001>
module attributes {stable_mosaic.version = 11 : i64} {
  func.func @dqn_kernel(%arg0: i32, %arg1: memref<16x128xbf16, #tpu.memory_space<vmem>>, %arg2: memref<128x128xbf16, #tpu.memory_space<vmem>>, %arg3: memref<1x128xf32, #tpu.memory_space<vmem>>, %arg4: memref<128x256xbf16, #tpu.memory_space<vmem>>, %arg5: memref<1x256xf32, #tpu.memory_space<vmem>>, %arg6: memref<256x128xbf16, #tpu.memory_space<vmem>>, %arg7: memref<1x128xf32, #tpu.memory_space<vmem>>, %arg8: memref<128x128xbf16, #tpu.memory_space<vmem>>, %arg9: memref<1x128xf32, #tpu.memory_space<vmem>>, %arg10: memref<16x128xbf16, #tpu.memory_space<vmem>>) attributes {dimension_semantics = [#tpu.dimension_semantics<parallel>], iteration_bounds = array<i64: 1>, scalar_prefetch = 0 : i64, scratch_operands = 0 : i64, tpu.core_type = #tpu.core_type<tc>, window_params = [{transform_indices = @transform_0, window_bounds = array<i64: 16, 128>}, {pipeline_mode = #tpu.pipeline_mode<synchronous>, transform_indices = @transform_1, window_bounds = array<i64: 128, 128>}, {pipeline_mode = #tpu.pipeline_mode<synchronous>, transform_indices = @transform_2, window_bounds = array<i64: 1, 128>}, {pipeline_mode = #tpu.pipeline_mode<synchronous>, transform_indices = @transform_3, window_bounds = array<i64: 128, 256>}, {pipeline_mode = #tpu.pipeline_mode<synchronous>, transform_indices = @transform_4, window_bounds = array<i64: 1, 256>}, {pipeline_mode = #tpu.pipeline_mode<synchronous>, transform_indices = @transform_5, window_bounds = array<i64: 256, 128>}, {pipeline_mode = #tpu.pipeline_mode<synchronous>, transform_indices = @transform_6, window_bounds = array<i64: 1, 128>}, {pipeline_mode = #tpu.pipeline_mode<synchronous>, transform_indices = @transform_7, window_bounds = array<i64: 128, 128>}, {pipeline_mode = #tpu.pipeline_mode<synchronous>, transform_indices = @transform_8, window_bounds = array<i64: 1, 128>}, {transform_indices = @transform_9, window_bounds = array<i64: 16, 128>}]} {
    %c0 = arith.constant 0 : index
    %c0_0 = arith.constant 0 : index
    %0 = vector.load %arg1[%c0, %c0_0] : memref<16x128xbf16, #tpu.memory_space<vmem>>, vector<16x128xbf16>
    %c0_1 = arith.constant 0 : index
    %c0_2 = arith.constant 0 : index
    %1 = vector.load %arg2[%c0_1, %c0_2] : memref<128x128xbf16, #tpu.memory_space<vmem>>, vector<128x128xbf16>
    %cst = arith.constant dense<0.000000e+00> : vector<16x128xf32>
    %2 = tpu.matmul %0, %1, %cst {dimension_numbers = #tpu.dot_dimension_numbers<[1], [0], [0], [1], [0, 0, 1, 1], [], []>} : vector<16x128xbf16>, vector<128x128xbf16>, vector<16x128xf32> -> vector<16x128xf32>
    %c0_3 = arith.constant 0 : index
    %c0_4 = arith.constant 0 : index
    %3 = vector.load %arg3[%c0_3, %c0_4] : memref<1x128xf32, #tpu.memory_space<vmem>>, vector<1x128xf32>
    %4 = vector.broadcast %3 : vector<1x128xf32> to vector<16x128xf32>
    %5 = arith.addf %2, %4 : vector<16x128xf32>
    %cst_5 = arith.constant 0.000000e+00 : f32
    %6 = vector.broadcast %cst_5 : f32 to vector<16x128xf32>
    %7 = arith.maximumf %5, %6 : vector<16x128xf32>
    %8 = arith.truncf %7 : vector<16x128xf32> to vector<16x128xbf16>
    %c0_6 = arith.constant 0 : index
    %c0_7 = arith.constant 0 : index
    %9 = vector.load %arg4[%c0_6, %c0_7] : memref<128x256xbf16, #tpu.memory_space<vmem>>, vector<128x256xbf16>
    %cst_8 = arith.constant dense<0.000000e+00> : vector<16x256xf32>
    %10 = tpu.matmul %8, %9, %cst_8 {dimension_numbers = #tpu.dot_dimension_numbers<[1], [0], [0], [1], [0, 0, 1, 1], [], []>} : vector<16x128xbf16>, vector<128x256xbf16>, vector<16x256xf32> -> vector<16x256xf32>
    %c0_9 = arith.constant 0 : index
    %c0_10 = arith.constant 0 : index
    %11 = vector.load %arg5[%c0_9, %c0_10] : memref<1x256xf32, #tpu.memory_space<vmem>>, vector<1x256xf32>
    %12 = vector.broadcast %11 : vector<1x256xf32> to vector<16x256xf32>
    %13 = arith.addf %10, %12 : vector<16x256xf32>
    %cst_11 = arith.constant 0.000000e+00 : f32
    %14 = vector.broadcast %cst_11 : f32 to vector<16x256xf32>
    %15 = arith.maximumf %13, %14 : vector<16x256xf32>
    %16 = arith.truncf %15 : vector<16x256xf32> to vector<16x256xbf16>
    %c0_12 = arith.constant 0 : index
    %c0_13 = arith.constant 0 : index
    %17 = vector.load %arg6[%c0_12, %c0_13] : memref<256x128xbf16, #tpu.memory_space<vmem>>, vector<256x128xbf16>
    %cst_14 = arith.constant dense<0.000000e+00> : vector<16x128xf32>
    %18 = tpu.matmul %16, %17, %cst_14 {dimension_numbers = #tpu.dot_dimension_numbers<[1], [0], [0], [1], [0, 0, 1, 1], [], []>} : vector<16x256xbf16>, vector<256x128xbf16>, vector<16x128xf32> -> vector<16x128xf32>
    %c0_15 = arith.constant 0 : index
    %c0_16 = arith.constant 0 : index
    %19 = vector.load %arg7[%c0_15, %c0_16] : memref<1x128xf32, #tpu.memory_space<vmem>>, vector<1x128xf32>
    %20 = vector.broadcast %19 : vector<1x128xf32> to vector<16x128xf32>
    %21 = arith.addf %18, %20 : vector<16x128xf32>
    %cst_17 = arith.constant 0.000000e+00 : f32
    %22 = vector.broadcast %cst_17 : f32 to vector<16x128xf32>
    %23 = arith.maximumf %21, %22 : vector<16x128xf32>
    %24 = arith.truncf %23 : vector<16x128xf32> to vector<16x128xbf16>
    %c0_18 = arith.constant 0 : index
    %c0_19 = arith.constant 0 : index
    %25 = vector.load %arg8[%c0_18, %c0_19] : memref<128x128xbf16, #tpu.memory_space<vmem>>, vector<128x128xbf16>
    %cst_20 = arith.constant dense<0.000000e+00> : vector<16x128xf32>
    %26 = tpu.matmul %24, %25, %cst_20 {dimension_numbers = #tpu.dot_dimension_numbers<[1], [0], [0], [1], [0, 0, 1, 1], [], []>} : vector<16x128xbf16>, vector<128x128xbf16>, vector<16x128xf32> -> vector<16x128xf32>
    %c0_21 = arith.constant 0 : index
    %c0_22 = arith.constant 0 : index
    %27 = vector.load %arg9[%c0_21, %c0_22] : memref<1x128xf32, #tpu.memory_space<vmem>>, vector<1x128xf32>
    %28 = vector.broadcast %27 : vector<1x128xf32> to vector<16x128xf32>
    %29 = arith.addf %26, %28 : vector<16x128xf32>
    %30 = arith.truncf %29 : vector<16x128xf32> to vector<16x128xbf16>
    %c0_23 = arith.constant 0 : index
    %c0_24 = arith.constant 0 : index
    %31 = vector.load %arg10[%c0_23, %c0_24] : memref<16x128xbf16, #tpu.memory_space<vmem>>, vector<16x128xbf16>
    tpu.vector_store %arg10[%c0_23, %c0_24], %30 {strides = array<i32>} : memref<16x128xbf16, #tpu.memory_space<vmem>>, vector<16x128xbf16>,
    return
  }
  func.func @transform_0(%arg0: i32) -> (i32, i32) {
    %c0_i32 = arith.constant 0 : i32
    %c0_i32_0 = arith.constant 0 : i32
    return %arg0, %c0_i32 : i32, i32
  }
  func.func @transform_1(%arg0: i32) -> (i32, i32) {
    %c0_i32 = arith.constant 0 : i32
    %c0_i32_0 = arith.constant 0 : i32
    %c0_i32_1 = arith.constant 0 : i32
    return %c0_i32, %c0_i32_0 : i32, i32
  }
  func.func @transform_2(%arg0: i32) -> (i32, i32) {
    %c0_i32 = arith.constant 0 : i32
    %c0_i32_0 = arith.constant 0 : i32
    %c0_i32_1 = arith.constant 0 : i32
    return %c0_i32, %c0_i32_0 : i32, i32
  }
  func.func @transform_3(%arg0: i32) -> (i32, i32) {
    %c0_i32 = arith.constant 0 : i32
    %c0_i32_0 = arith.constant 0 : i32
    %c0_i32_1 = arith.constant 0 : i32
    return %c0_i32, %c0_i32_0 : i32, i32
  }
  func.func @transform_4(%arg0: i32) -> (i32, i32) {
    %c0_i32 = arith.constant 0 : i32
    %c0_i32_0 = arith.constant 0 : i32
    %c0_i32_1 = arith.constant 0 : i32
    return %c0_i32, %c0_i32_0 : i32, i32
  }
  func.func @transform_5(%arg0: i32) -> (i32, i32) {
    %c0_i32 = arith.constant 0 : i32
    %c0_i32_0 = arith.constant 0 : i32
    %c0_i32_1 = arith.constant 0 : i32
    return %c0_i32, %c0_i32_0 : i32, i32
  }
  func.func @transform_6(%arg0: i32) -> (i32, i32) {
    %c0_i32 = arith.constant 0 : i32
    %c0_i32_0 = arith.constant 0 : i32
    %c0_i32_1 = arith.constant 0 : i32
    return %c0_i32, %c0_i32_0 : i32, i32
  }
  func.func @transform_7(%arg0: i32) -> (i32, i32) {
    %c0_i32 = arith.constant 0 : i32
    %c0_i32_0 = arith.constant 0 : i32
    %c0_i32_1 = arith.constant 0 : i32
    return %c0_i32, %c0_i32_0 : i32, i32
  }
  func.func @transform_8(%arg0: i32) -> (i32, i32) {
    %c0_i32 = arith.constant 0 : i32
    %c0_i32_0 = arith.constant 0 : i32
    %c0_i32_1 = arith.constant 0 : i32
    return %c0_i32, %c0_i32_0 : i32, i32
  }
  func.func @transform_9(%arg0: i32) -> (i32, i32) {
    %c0_i32 = arith.constant 0 : i32
    %c0_i32_0 = arith.constant 0 : i32
    return %arg0, %c0_i32 : i32, i32
  }
}

</mosaic_0001>

<llo_original>
// kernel: dqn_forward.1
$region0: #{dqn_forward.1}
  #allocation0 [shape = 'u32[]', space=smem, size = 0x4, offset = 0x4, fixed_abs, tag = 'smem constant byte address 0x4 - core index']
  #allocation1 [shape = 'u32[144,128]{1,0:T(1,128)}', space=vmem, size = 0x12000, scoped, tag = 'internal scratch']
  %s0 = inlined_call_operand.vmem [shape: bf16[16,128], index: 0, kind: input, shape index: {}]
  %s1 = inlined_call_operand.hbm [shape: bf16[128,128], index: 1, kind: input, shape index: {}]
  %s2 = inlined_call_operand.vmem [shape: f32[1,128], index: 2, kind: input, shape index: {}]
  %s3 = inlined_call_operand.hbm [shape: bf16[128,256], index: 3, kind: input, shape index: {}]
  %s4 = inlined_call_operand.vmem [shape: f32[1,256], index: 4, kind: input, shape index: {}]
  %s5 = inlined_call_operand.hbm [shape: bf16[256,128], index: 5, kind: input, shape index: {}]
  %s6 = inlined_call_operand.vmem [shape: f32[1,128], index: 6, kind: input, shape index: {}]
  %s7 = inlined_call_operand.hbm [shape: bf16[128,128], index: 7, kind: input, shape index: {}]
  %s8 = inlined_call_operand.vmem [shape: f32[1,128], index: 8, kind: input, shape index: {}]
  %s9 = inlined_call_operand.vmem [shape: bf16[16,128], index: 9, kind: output, shape index: {}]
  %s10 = sld [smem:[#allocation0]]
  $region62: #{dqn_forward.1} parent=0
    _
  %s12 = ssub.s32 1, %s10
  %s13 = scalar_select 0, %s12, %s10
  $region1: #{dqn_forward.1} parent=0
    #allocation2 [shape = 'u8[32768]{0}', space=vmem, size = 0x8000, scoped, tag = 'input window, operand 1, single buffered']
    #allocation3 [shape = 's32[1]{0}', space=sflag, size = 0x4, scoped, tag = 'scoped memory for dqn_forward.1']
    #allocation4 [shape = 'u8[65536]{0}', space=vmem, size = 0x10000, scoped, tag = 'input window, operand 3, single buffered']
    #allocation5 [shape = 's32[1]{0}', space=sflag, size = 0x4, scoped, tag = 'scoped memory for dqn_forward.1']
    #allocation6 [shape = 'u8[65536]{0}', space=vmem, size = 0x10000, scoped, tag = 'input window, operand 5, single buffered']
    #allocation7 [shape = 'u8[32768]{0}', space=vmem, size = 0x8000, scoped, tag = 'input window, operand 7, single buffered']
    #allocation8 [shape = 's32[1]{0}', space=sflag, size = 0x4, scoped, tag = 'scoped memory for dqn_forward.1']
    %14 = vsyncpa [#allocation3], 0
    %15 = vsyncpa [#allocation5], 0
    %16 = vsyncpa [#allocation8], 0
    // Predicated region
    $region2: #{dqn_forward.1} parent=1 // pred_check
      _
    $region3: #{dqn_forward.1} parent=1 // pred_check_branch
      %18 = sbr.rel (0) target = $region5
    $region4: #{dqn_forward.1} parent=1 // pred_region
      _
    $region5: #{dqn_forward.1} parent=1 // pred_fallthru
      _
    // Predicated region
    $region6: #{dqn_forward.1} parent=1 // pred_check
      _
    $region7: #{dqn_forward.1} parent=1 // pred_check_branch
      %20 = sbr.rel (0) target = $region9
    $region8: #{dqn_forward.1} parent=1 // pred_region
      %s22 = ssub.s32 1024, 1024
      %23 = vsyncadd [#allocation3], %s22
      %s24 = sshll.u32 [#allocation2], 4
      %s25 = int_to_ptr.vmem [resolvable:$true] %s24
      %30 = dma.hbm_to_vmem [thread:$0]  %s1, 1024, %s25, [#allocation3], 64, 64, 4
    $region9: #{dqn_forward.1} parent=1 // pred_fallthru
      _
    // Predicated region
    $region10: #{dqn_forward.1} parent=1 // pred_check
      _
    $region11: #{dqn_forward.1} parent=1 // pred_check_branch
      %32 = sbr.rel (0) target = $region13
    $region12: #{dqn_forward.1} parent=1 // pred_region
      _
    $region13: #{dqn_forward.1} parent=1 // pred_fallthru
      _
    // Predicated region
    $region14: #{dqn_forward.1} parent=1 // pred_check
      _
    $region15: #{dqn_forward.1} parent=1 // pred_check_branch
      %34 = sbr.rel (0) target = $region17
    $region16: #{dqn_forward.1} parent=1 // pred_region
      %s36 = ssub.s32 2048, 2048
      %37 = vsyncadd [#allocation5], %s36
      %s38 = sshll.u32 [#allocation4], 4
      %s39 = int_to_ptr.vmem [resolvable:$true] %s38
      %44 = dma.hbm_to_vmem [thread:$0]  %s3, 2048, %s39, [#allocation5], 128, 128, 8
    $region17: #{dqn_forward.1} parent=1 // pred_fallthru
      _
    // Predicated region
    $region18: #{dqn_forward.1} parent=1 // pred_check
      _
    $region19: #{dqn_forward.1} parent=1 // pred_check_branch
      %46 = sbr.rel (0) target = $region21
    $region20: #{dqn_forward.1} parent=1 // pred_region
      _
    $region21: #{dqn_forward.1} parent=1 // pred_fallthru
      _
    // Predicated region
    $region22: #{dqn_forward.1} parent=1 // pred_check
      _
    $region23: #{dqn_forward.1} parent=1 // pred_check_branch
      %48 = sbr.rel (0) target = $region25
    $region24: #{dqn_forward.1} parent=1 // pred_region
      %s50 = ssub.s32 2048, 2048
      %51 = vsyncadd [#allocation5], %s50
      %s52 = sshll.u32 [#allocation6], 4
      %s53 = int_to_ptr.vmem [resolvable:$true] %s52
      %58 = dma.hbm_to_vmem [thread:$0]  %s5, 2048, %s53, [#allocation5], 64, 64, 4
    $region25: #{dqn_forward.1} parent=1 // pred_fallthru
      _
    // Predicated region
    $region26: #{dqn_forward.1} parent=1 // pred_check
      _
    $region27: #{dqn_forward.1} parent=1 // pred_check_branch
      %60 = sbr.rel (0) target = $region29
    $region28: #{dqn_forward.1} parent=1 // pred_region
      _
    $region29: #{dqn_forward.1} parent=1 // pred_fallthru
      _
    // Predicated region
    $region30: #{dqn_forward.1} parent=1 // pred_check
      _
    $region31: #{dqn_forward.1} parent=1 // pred_check_branch
      %62 = sbr.rel (0) target = $region33
    $region32: #{dqn_forward.1} parent=1 // pred_region
      %s64 = ssub.s32 1024, 1024
      %65 = vsyncadd [#allocation8], %s64
      %s66 = sshll.u32 [#allocation7], 4
      %s67 = int_to_ptr.vmem [resolvable:$true] %s66
      %72 = dma.hbm_to_vmem [thread:$0]  %s7, 1024, %s67, [#allocation8], 64, 64, 4
    $region33: #{dqn_forward.1} parent=1 // pred_fallthru
      _
    // Predicated region
    $region34: #{dqn_forward.1} parent=1 // pred_check
      _
    $region35: #{dqn_forward.1} parent=1 // pred_check_branch
      %74 = sbr.rel (0) target = $region37
    $region36: #{dqn_forward.1} parent=1 // pred_region
      _
    $region37: #{dqn_forward.1} parent=1 // pred_fallthru
      _
    // Predicated region
    $region38: #{dqn_forward.1} parent=1 // pred_check
      _
    $region39: #{dqn_forward.1} parent=1 // pred_check_branch
      %76 = sbr.rel (0) target = $region41
    $region40: #{dqn_forward.1} parent=1 // pred_region
      %77 = dma.done [#allocation3], 1024
    $region41: #{dqn_forward.1} parent=1 // pred_fallthru
      _
    // Predicated region
    $region42: #{dqn_forward.1} parent=1 // pred_check
      _
    $region43: #{dqn_forward.1} parent=1 // pred_check_branch
      %79 = sbr.rel (0) target = $region45
    $region44: #{dqn_forward.1} parent=1 // pred_region
      %80 = dma.done [#allocation5], 2048
    $region45: #{dqn_forward.1} parent=1 // pred_fallthru
      _
    // Predicated region
    $region46: #{dqn_forward.1} parent=1 // pred_check
      _
    $region47: #{dqn_forward.1} parent=1 // pred_check_branch
      %82 = sbr.rel (0) target = $region49
    $region48: #{dqn_forward.1} parent=1 // pred_region
      %83 = dma.done [#allocation5], 2048
    $region49: #{dqn_forward.1} parent=1 // pred_fallthru
      _
    // Predicated region
    $region50: #{dqn_forward.1} parent=1 // pred_check
      _
    $region51: #{dqn_forward.1} parent=1 // pred_check_branch
      %85 = sbr.rel (0) target = $region53
    $region52: #{dqn_forward.1} parent=1 // pred_region
      %86 = dma.done [#allocation8], 1024
    $region53: #{dqn_forward.1} parent=1 // pred_fallthru
      _
    %v88 = vld [vmem:[%s0] sm:$0xf]
    %v89 = vld [vmem:[%s0 + $0x4] sm:$0xf]
    %v90 = vld [vmem:[#allocation2] sm:$0xf]
    %v91 = vld [vmem:[#allocation2 + $0x4] sm:$0xf]
    %v92 = vld [vmem:[#allocation2 + $0x8] sm:$0xf]
    %v93 = vld [vmem:[#allocation2 + $0xc] sm:$0xf]
    %v94 = vld [vmem:[#allocation2 + $0x10] sm:$0xf]
    %v95 = vld [vmem:[#allocation2 + $0x14] sm:$0xf]
    %v96 = vld [vmem:[#allocation2 + $0x18] sm:$0xf]
    %v97 = vld [vmem:[#allocation2 + $0x1c] sm:$0xf]
    %v98 = vld [vmem:[#allocation2 + $0x20] sm:$0xf]
    %v99 = vld [vmem:[#allocation2 + $0x24] sm:$0xf]
    %v100 = vld [vmem:[#allocation2 + $0x28] sm:$0xf]
    %v101 = vld [vmem:[#allocation2 + $0x2c] sm:$0xf]
    %v102 = vld [vmem:[#allocation2 + $0x30] sm:$0xf]
    %v103 = vld [vmem:[#allocation2 + $0x34] sm:$0xf]
    %v104 = vld [vmem:[#allocation2 + $0x38] sm:$0xf]
    %v105 = vld [vmem:[#allocation2 + $0x3c] sm:$0xf]
    %v106 = vld [vmem:[%s2] sm:$0x1]
    %v108 = vlaneseq
    %v109 = vshrl.u32 %v108, 7
    %v110 = vsub.s32 0, %v109
    %v111 = vrot.slane %v106, %v110
    %v115 = vunpack.c.l.b16 %v88
    %v116 = vunpack.c.l.b16 %v89
    %v117 = vpack.c.b16 %v116, %v115
    %v135 = vunpack.c.l.b16 %v90
    %v136 = vunpack.c.l.b16 %v91
    %v137 = vunpack.c.l.b16 %v92
    %v138 = vunpack.c.l.b16 %v93
    %v139 = vunpack.c.l.b16 %v94
    %v140 = vunpack.c.l.b16 %v95
    %v141 = vunpack.c.l.b16 %v96
    %v142 = vunpack.c.l.b16 %v97
    %v143 = vunpack.c.l.b16 %v98
    %v144 = vunpack.c.l.b16 %v99
    %v145 = vunpack.c.l.b16 %v100
    %v146 = vunpack.c.l.b16 %v101
    %v147 = vunpack.c.l.b16 %v102
    %v148 = vunpack.c.l.b16 %v103
    %v149 = vunpack.c.l.b16 %v104
    %v150 = vunpack.c.l.b16 %v105
    %v151 = vpack.c.b16 %v136, %v135
    %v152 = vpack.c.b16 %v138, %v137
    %v153 = vpack.c.b16 %v140, %v139
    %v154 = vpack.c.b16 %v142, %v141
    %v155 = vpack.c.b16 %v144, %v143
    %v156 = vpack.c.b16 %v146, %v145
    %v157 = vpack.c.b16 %v148, %v147
    %v158 = vpack.c.b16 %v150, %v149
    %167 = vmatprep.subr.bf16.mxu0 0
    %168 = vmatpush1.bf16.msra.mxu0 %v151
    %169 = vmatprep.subr.bf16.mxu0 0
    %170 = vmatpush1.bf16.msra.mxu0 %v152
    %171 = vmatprep.subr.bf16.mxu0 0
    %172 = vmatpush1.bf16.msra.mxu0 %v153
    %173 = vmatprep.subr.bf16.mxu0 0
    %174 = vmatpush1.bf16.msra.mxu0 %v154
    %175 = vmatprep.subr.bf16.mxu0 0
    %176 = vmatpush1.bf16.msra.mxu0 %v155
    %177 = vmatprep.subr.bf16.mxu0 0
    %178 = vmatpush1.bf16.msra.mxu0 %v156
    %179 = vmatprep.subr.bf16.mxu0 0
    %180 = vmatpush1.bf16.msra.mxu0 %v157
    %181 = vmatprep.subr.bf16.mxu0 0
    %182 = vmatpush1.bf16.msra.mxu0 %v158
    %183 = vmatprep.subr.bf16.mxu0 0
    %184 = vmatpush1.bf16.msra.mxu0 0
    %185 = vmatprep.subr.bf16.mxu0 0
    %186 = vmatpush1.bf16.msra.mxu0 0
    %187 = vmatprep.subr.bf16.mxu0 0
    %188 = vmatpush1.bf16.msra.mxu0 0
    %189 = vmatprep.subr.bf16.mxu0 0
    %190 = vmatpush1.bf16.msra.mxu0 0
    %191 = vmatprep.subr.bf16.mxu0 0
    %192 = vmatpush1.bf16.msra.mxu0 0
    %193 = vmatprep.subr.bf16.mxu0 0
    %194 = vmatpush1.bf16.msra.mxu0 0
    %195 = vmatprep.subr.bf16.mxu0 0
    %196 = vmatpush1.bf16.msra.mxu0 0
    %197 = vmatprep.subr.bf16.mxu0 0
    %198 = vmatpush1.bf16.msra.mxu0 0
    %199 = vmatprep.mubr.bf16.mxu0 0
    %200 = vmatmul.mubr.bf16.gmra.mrb[0].mxu0 %v117
    %v201 = vpop.f32.mrb[0].mxu0
    %v202 = vadd.f32 %v111, %v201
    %v203 = vpop.f32.mrb[0].mxu0
    %v204 = vpop.f32.mrb[0].mxu0
    %v205 = vadd.f32 %v111, %v204
    %v206 = vpop.f32.mrb[0].mxu0
    %207 = vdwg.mxu0
    %v208 = vmax.f32 %v202, 0.0
    %v209 = vmax.f32 %v205, 0.0
    %v210 = vpack.c.bf16 %v209, %v208
    %v211 = vld [vmem:[#allocation4] sm:$0xff]
    %v212 = vld [vmem:[#allocation4 + $0x8] sm:$0xff]
    %v213 = vld [vmem:[#allocation4 + $0x10] sm:$0xff]
    %v214 = vld [vmem:[#allocation4 + $0x18] sm:$0xff]
    %v215 = vld [vmem:[#allocation4 + $0x20] sm:$0xff]
    %v216 = vld [vmem:[#allocation4 + $0x28] sm:$0xff]
    %v217 = vld [vmem:[#allocation4 + $0x30] sm:$0xff]
    %v218 = vld [vmem:[#allocation4 + $0x38] sm:$0xff]
    %v219 = vld [vmem:[#allocation4 + $0x40] sm:$0xff]
    %v220 = vld [vmem:[#allocation4 + $0x48] sm:$0xff]
    %v221 = vld [vmem:[#allocation4 + $0x50] sm:$0xff]
    %v222 = vld [vmem:[#allocation4 + $0x58] sm:$0xff]
    %v223 = vld [vmem:[#allocation4 + $0x60] sm:$0xff]
    %v224 = vld [vmem:[#allocation4 + $0x68] sm:$0xff]
    %v225 = vld [vmem:[#allocation4 + $0x70] sm:$0xff]
    %v226 = vld [vmem:[#allocation4 + $0x78] sm:$0xff]
    %v227 = vld [vmem:[%s4] sm:$0x3]
    %v229 = vlaneseq
    %v230 = vshrl.u32 %v229, 7
    %v231 = vsub.s32 0, %v230
    %v232 = vrot.slane %v227, %v231
    %v233 = vlaneseq
    %v234 = vshrl.u32 %v233, 7
    %v235 = vsub.s32 1, %v234
    %v236 = vrot.slane %v227, %v235
    %v255 = vunpack.c.l.b16 %v211
    %v256 = vunpack.c.h.b16 %v211
    %v257 = vunpack.c.l.b16 %v212
    %v258 = vunpack.c.h.b16 %v212
    %v259 = vunpack.c.l.b16 %v213
    %v260 = vunpack.c.h.b16 %v213
    %v261 = vunpack.c.l.b16 %v214
    %v262 = vunpack.c.h.b16 %v214
    %v263 = vunpack.c.l.b16 %v215
    %v264 = vunpack.c.h.b16 %v215
    %v265 = vunpack.c.l.b16 %v216
    %v266 = vunpack.c.h.b16 %v216
    %v267 = vunpack.c.l.b16 %v217
    %v268 = vunpack.c.h.b16 %v217
    %v269 = vunpack.c.l.b16 %v218
    %v270 = vunpack.c.h.b16 %v218
    %v271 = vunpack.c.l.b16 %v219
    %v272 = vunpack.c.h.b16 %v219
    %v273 = vunpack.c.l.b16 %v220
    %v274 = vunpack.c.h.b16 %v220
    %v275 = vunpack.c.l.b16 %v221
    %v276 = vunpack.c.h.b16 %v221
    %v277 = vunpack.c.l.b16 %v222
    %v278 = vunpack.c.h.b16 %v222
    %v279 = vunpack.c.l.b16 %v223
    %v280 = vunpack.c.h.b16 %v223
    %v281 = vunpack.c.l.b16 %v224
    %v282 = vunpack.c.h.b16 %v224
    %v283 = vunpack.c.l.b16 %v225
    %v284 = vunpack.c.h.b16 %v225
    %v285 = vunpack.c.l.b16 %v226
    %v286 = vunpack.c.h.b16 %v226
    %v287 = vpack.c.b16 %v257, %v255
    %v288 = vpack.c.b16 %v258, %v256
    %v289 = vpack.c.b16 %v261, %v259
    %v290 = vpack.c.b16 %v262, %v260
    %v291 = vpack.c.b16 %v265, %v263
    %v292 = vpack.c.b16 %v266, %v264
    %v293 = vpack.c.b16 %v269, %v267
    %v294 = vpack.c.b16 %v270, %v268
    %v295 = vpack.c.b16 %v273, %v271
    %v296 = vpack.c.b16 %v274, %v272
    %v297 = vpack.c.b16 %v277, %v275
    %v298 = vpack.c.b16 %v278, %v276
    %v299 = vpack.c.b16 %v281, %v279
    %v300 = vpack.c.b16 %v282, %v280
    %v301 = vpack.c.b16 %v285, %v283
    %v302 = vpack.c.b16 %v286, %v284
    %319 = vmatprep.subr.bf16.mxu0 %v288
    %320 = vmatpush1.bf16.msra.mxu0 %v287
    %321 = vmatprep.subr.bf16.mxu0 %v290
    %322 = vmatpush1.bf16.msra.mxu0 %v289
    %323 = vmatprep.subr.bf16.mxu0 %v292
    %324 = vmatpush1.bf16.msra.mxu0 %v291
    %325 = vmatprep.subr.bf16.mxu0 %v294
    %326 = vmatpush1.bf16.msra.mxu0 %v293
    %327 = vmatprep.subr.bf16.mxu0 %v296
    %328 = vmatpush1.bf16.msra.mxu0 %v295
    %329 = vmatprep.subr.bf16.mxu0 %v298
    %330 = vmatpush1.bf16.msra.mxu0 %v297
    %331 = vmatprep.subr.bf16.mxu0 %v300
    %332 = vmatpush1.bf16.msra.mxu0 %v299
    %333 = vmatprep.subr.bf16.mxu0 %v302
    %334 = vmatpush1.bf16.msra.mxu0 %v301
    %335 = vmatprep.subr.bf16.mxu0 0
    %336 = vmatpush1.bf16.msra.mxu0 0
    %337 = vmatprep.subr.bf16.mxu0 0
    %338 = vmatpush1.bf16.msra.mxu0 0
    %339 = vmatprep.subr.bf16.mxu0 0
    %340 = vmatpush1.bf16.msra.mxu0 0
    %341 = vmatprep.subr.bf16.mxu0 0
    %342 = vmatpush1.bf16.msra.mxu0 0
    %343 = vmatprep.subr.bf16.mxu0 0
    %344 = vmatpush1.bf16.msra.mxu0 0
    %345 = vmatprep.subr.bf16.mxu0 0
    %346 = vmatpush1.bf16.msra.mxu0 0
    %347 = vmatprep.subr.bf16.mxu0 0
    %348 = vmatpush1.bf16.msra.mxu0 0
    %349 = vmatprep.subr.bf16.mxu0 0
    %350 = vmatpush1.bf16.msra.mxu0 0
    %351 = vmatprep.mubr.bf16.mxu0 0
    %352 = vmatmul.mubr.bf16.gmra.mrb[0].mxu0 %v210
    %v353 = vpop.f32.mrb[0].mxu0
    %v354 = vadd.f32 %v232, %v353
    %v355 = vpop.f32.mrb[0].mxu0
    %v356 = vadd.f32 %v236, %v355
    %v357 = vpop.f32.mrb[0].mxu0
    %v358 = vadd.f32 %v232, %v357
    %v359 = vpop.f32.mrb[0].mxu0
    %v360 = vadd.f32 %v236, %v359
    %361 = vdwg.mxu0
    %v362 = vmax.f32 %v354, 0.0
    %v363 = vmax.f32 %v356, 0.0
    %v364 = vmax.f32 %v358, 0.0
    %v365 = vmax.f32 %v360, 0.0
    %v366 = vpack.c.bf16 %v364, %v362
    %v367 = vpack.c.bf16 %v365, %v363
    %v368 = vld [vmem:[#allocation6] sm:$0xf]
    %v369 = vld [vmem:[#allocation6 + $0x4] sm:$0xf]
    %v370 = vld [vmem:[#allocation6 + $0x8] sm:$0xf]
    %v371 = vld [vmem:[#allocation6 + $0xc] sm:$0xf]
    %v372 = vld [vmem:[#allocation6 + $0x10] sm:$0xf]
    %v373 = vld [vmem:[#allocation6 + $0x14] sm:$0xf]
    %v374 = vld [vmem:[#allocation6 + $0x18] sm:$0xf]
    %v375 = vld [vmem:[#allocation6 + $0x1c] sm:$0xf]
    %v376 = vld [vmem:[#allocation6 + $0x20] sm:$0xf]
    %v377 = vld [vmem:[#allocation6 + $0x24] sm:$0xf]
    %v378 = vld [vmem:[#allocation6 + $0x28] sm:$0xf]
    %v379 = vld [vmem:[#allocation6 + $0x2c] sm:$0xf]
    %v380 = vld [vmem:[#allocation6 + $0x30] sm:$0xf]
    %v381 = vld [vmem:[#allocation6 + $0x34] sm:$0xf]
    %v382 = vld [vmem:[#allocation6 + $0x38] sm:$0xf]
    %v383 = vld [vmem:[#allocation6 + $0x3c] sm:$0xf]
    %v384 = vld [vmem:[#allocation6 + $0x40] sm:$0xf]
    %v385 = vld [vmem:[#allocation6 + $0x44] sm:$0xf]
    %v386 = vld [vmem:[#allocation6 + $0x48] sm:$0xf]
    %v387 = vld [vmem:[#allocation6 + $0x4c] sm:$0xf]
    %v388 = vld [vmem:[#allocation6 + $0x50] sm:$0xf]
    %v389 = vld [vmem:[#allocation6 + $0x54] sm:$0xf]
    %v390 = vld [vmem:[#allocation6 + $0x58] sm:$0xf]
    %v391 = vld [vmem:[#allocation6 + $0x5c] sm:$0xf]
    %v392 = vld [vmem:[#allocation6 + $0x60] sm:$0xf]
    %v393 = vld [vmem:[#allocation6 + $0x64] sm:$0xf]
    %v394 = vld [vmem:[#allocation6 + $0x68] sm:$0xf]
    %v395 = vld [vmem:[#allocation6 + $0x6c] sm:$0xf]
    %v396 = vld [vmem:[#allocation6 + $0x70] sm:$0xf]
    %v397 = vld [vmem:[#allocation6 + $0x74] sm:$0xf]
    %v398 = vld [vmem:[#allocation6 + $0x78] sm:$0xf]
    %v399 = vld [vmem:[#allocation6 + $0x7c] sm:$0xf]
    %v400 = vld [vmem:[%s6] sm:$0x1]
    %v402 = vlaneseq
    %v403 = vshrl.u32 %v402, 7
    %v404 = vsub.s32 0, %v403
    %v405 = vrot.slane %v400, %v404
    %v439 = vunpack.c.l.b16 %v368
    %v440 = vunpack.c.l.b16 %v369
    %v441 = vunpack.c.l.b16 %v370
    %v442 = vunpack.c.l.b16 %v371
    %v443 = vunpack.c.l.b16 %v372
    %v444 = vunpack.c.l.b16 %v373
    %v445 = vunpack.c.l.b16 %v374
    %v446 = vunpack.c.l.b16 %v375
    %v447 = vunpack.c.l.b16 %v376
    %v448 = vunpack.c.l.b16 %v377
    %v449 = vunpack.c.l.b16 %v378
    %v450 = vunpack.c.l.b16 %v379
    %v451 = vunpack.c.l.b16 %v380
    %v452 = vunpack.c.l.b16 %v381
    %v453 = vunpack.c.l.b16 %v382
    %v454 = vunpack.c.l.b16 %v383
    %v455 = vunpack.c.l.b16 %v384
    %v456 = vunpack.c.l.b16 %v385
    %v457 = vunpack.c.l.b16 %v386
    %v458 = vunpack.c.l.b16 %v387
    %v459 = vunpack.c.l.b16 %v388
    %v460 = vunpack.c.l.b16 %v389
    %v461 = vunpack.c.l.b16 %v390
    %v462 = vunpack.c.l.b16 %v391
    %v463 = vunpack.c.l.b16 %v392
    %v464 = vunpack.c.l.b16 %v393
    %v465 = vunpack.c.l.b16 %v394
    %v466 = vunpack.c.l.b16 %v395
    %v467 = vunpack.c.l.b16 %v396
    %v468 = vunpack.c.l.b16 %v397
    %v469 = vunpack.c.l.b16 %v398
    %v470 = vunpack.c.l.b16 %v399
    %v471 = vpack.c.b16 %v440, %v439
    %v472 = vpack.c.b16 %v442, %v441
    %v473 = vpack.c.b16 %v444, %v443
    %v474 = vpack.c.b16 %v446, %v445
    %v475 = vpack.c.b16 %v448, %v447
    %v476 = vpack.c.b16 %v450, %v449
    %v477 = vpack.c.b16 %v452, %v451
    %v478 = vpack.c.b16 %v454, %v453
    %v479 = vpack.c.b16 %v456, %v455
    %v480 = vpack.c.b16 %v458, %v457
    %v481 = vpack.c.b16 %v460, %v459
    %v482 = vpack.c.b16 %v462, %v461
    %v483 = vpack.c.b16 %v464, %v463
    %v484 = vpack.c.b16 %v466, %v465
    %v485 = vpack.c.b16 %v468, %v467
    %v486 = vpack.c.b16 %v470, %v469
    %503 = vmatprep.subr.bf16.mxu0 0
    %504 = vmatpush1.bf16.msra.mxu0 %v471
    %505 = vmatprep.subr.bf16.mxu0 0
    %506 = vmatpush1.bf16.msra.mxu0 %v472
    %507 = vmatprep.subr.bf16.mxu0 0
    %508 = vmatpush1.bf16.msra.mxu0 %v473
    %509 = vmatprep.subr.bf16.mxu0 0
    %510 = vmatpush1.bf16.msra.mxu0 %v474
    %511 = vmatprep.subr.bf16.mxu0 0
    %512 = vmatpush1.bf16.msra.mxu0 %v475
    %513 = vmatprep.subr.bf16.mxu0 0
    %514 = vmatpush1.bf16.msra.mxu0 %v476
    %515 = vmatprep.subr.bf16.mxu0 0
    %516 = vmatpush1.bf16.msra.mxu0 %v477
    %517 = vmatprep.subr.bf16.mxu0 0
    %518 = vmatpush1.bf16.msra.mxu0 %v478
    %519 = vmatprep.subr.bf16.mxu0 0
    %520 = vmatpush1.bf16.msra.mxu0 %v479
    %521 = vmatprep.subr.bf16.mxu0 0
    %522 = vmatpush1.bf16.msra.mxu0 %v480
    %523 = vmatprep.subr.bf16.mxu0 0
    %524 = vmatpush1.bf16.msra.mxu0 %v481
    %525 = vmatprep.subr.bf16.mxu0 0
    %526 = vmatpush1.bf16.msra.mxu0 %v482
    %527 = vmatprep.subr.bf16.mxu0 0
    %528 = vmatpush1.bf16.msra.mxu0 %v483
    %529 = vmatprep.subr.bf16.mxu0 0
    %530 = vmatpush1.bf16.msra.mxu0 %v484
    %531 = vmatprep.subr.bf16.mxu0 0
    %532 = vmatpush1.bf16.msra.mxu0 %v485
    %533 = vmatprep.subr.bf16.mxu0 0
    %534 = vmatpush1.bf16.msra.mxu0 %v486
    %535 = vmatprep.mubr.bf16.mxu0 %v367
    %536 = vmatmul.mubr.bf16.gmra.mrb[0].mxu0 %v366
    %v537 = vpop.f32.mrb[0].mxu0
    %v538 = vadd.f32 %v405, %v537
    %v539 = vpop.f32.mrb[0].mxu0
    %v540 = vpop.f32.mrb[0].mxu0
    %v541 = vadd.f32 %v405, %v540
    %v542 = vpop.f32.mrb[0].mxu0
    %543 = vdwg.mxu0
    %v544 = vmax.f32 %v538, 0.0
    %v545 = vmax.f32 %v541, 0.0
    %v546 = vpack.c.bf16 %v545, %v544
    %v547 = vld [vmem:[#allocation7] sm:$0xf]
    %v548 = vld [vmem:[#allocation7 + $0x4] sm:$0xf]
    %v549 = vld [vmem:[#allocation7 + $0x8] sm:$0xf]
    %v550 = vld [vmem:[#allocation7 + $0xc] sm:$0xf]
    %v551 = vld [vmem:[#allocation7 + $0x10] sm:$0xf]
    %v552 = vld [vmem:[#allocation7 + $0x14] sm:$0xf]
    %v553 = vld [vmem:[#allocation7 + $0x18] sm:$0xf]
    %v554 = vld [vmem:[#allocation7 + $0x1c] sm:$0xf]
    %v555 = vld [vmem:[#allocation7 + $0x20] sm:$0xf]
    %v556 = vld [vmem:[#allocation7 + $0x24] sm:$0xf]
    %v557 = vld [vmem:[#allocation7 + $0x28] sm:$0xf]
    %v558 = vld [vmem:[#allocation7 + $0x2c] sm:$0xf]
    %v559 = vld [vmem:[#allocation7 + $0x30] sm:$0xf]
    %v560 = vld [vmem:[#allocation7 + $0x34] sm:$0xf]
    %v561 = vld [vmem:[#allocation7 + $0x38] sm:$0xf]
    %v562 = vld [vmem:[#allocation7 + $0x3c] sm:$0xf]
    %v563 = vld [vmem:[%s8] sm:$0x1]
    %v565 = vlaneseq
    %v566 = vshrl.u32 %v565, 7
    %v567 = vsub.s32 0, %v566
    %v568 = vrot.slane %v563, %v567
    %v586 = vunpack.c.l.b16 %v547
    %v587 = vunpack.c.l.b16 %v548
    %v588 = vunpack.c.l.b16 %v549
    %v589 = vunpack.c.l.b16 %v550
    %v590 = vunpack.c.l.b16 %v551
    %v591 = vunpack.c.l.b16 %v552
    %v592 = vunpack.c.l.b16 %v553
    %v593 = vunpack.c.l.b16 %v554
    %v594 = vunpack.c.l.b16 %v555
    %v595 = vunpack.c.l.b16 %v556
    %v596 = vunpack.c.l.b16 %v557
    %v597 = vunpack.c.l.b16 %v558
    %v598 = vunpack.c.l.b16 %v559
    %v599 = vunpack.c.l.b16 %v560
    %v600 = vunpack.c.l.b16 %v561
    %v601 = vunpack.c.l.b16 %v562
    %v602 = vpack.c.b16 %v587, %v586
    %v603 = vpack.c.b16 %v589, %v588
    %v604 = vpack.c.b16 %v591, %v590
    %v605 = vpack.c.b16 %v593, %v592
    %v606 = vpack.c.b16 %v595, %v594
    %v607 = vpack.c.b16 %v597, %v596
    %v608 = vpack.c.b16 %v599, %v598
    %v609 = vpack.c.b16 %v601, %v600
    %618 = vmatprep.subr.bf16.mxu0 0
    %619 = vmatpush1.bf16.msra.mxu0 %v602
    %620 = vmatprep.subr.bf16.mxu0 0
    %621 = vmatpush1.bf16.msra.mxu0 %v603
    %622 = vmatprep.subr.bf16.mxu0 0
    %623 = vmatpush1.bf16.msra.mxu0 %v604
    %624 = vmatprep.subr.bf16.mxu0 0
    %625 = vmatpush1.bf16.msra.mxu0 %v605
    %626 = vmatprep.subr.bf16.mxu0 0
    %627 = vmatpush1.bf16.msra.mxu0 %v606
    %628 = vmatprep.subr.bf16.mxu0 0
    %629 = vmatpush1.bf16.msra.mxu0 %v607
    %630 = vmatprep.subr.bf16.mxu0 0
    %631 = vmatpush1.bf16.msra.mxu0 %v608
    %632 = vmatprep.subr.bf16.mxu0 0
    %633 = vmatpush1.bf16.msra.mxu0 %v609
    %634 = vmatprep.subr.bf16.mxu0 0
    %635 = vmatpush1.bf16.msra.mxu0 0
    %636 = vmatprep.subr.bf16.mxu0 0
    %637 = vmatpush1.bf16.msra.mxu0 0
    %638 = vmatprep.subr.bf16.mxu0 0
    %639 = vmatpush1.bf16.msra.mxu0 0
    %640 = vmatprep.subr.bf16.mxu0 0
    %641 = vmatpush1.bf16.msra.mxu0 0
    %642 = vmatprep.subr.bf16.mxu0 0
    %643 = vmatpush1.bf16.msra.mxu0 0
    %644 = vmatprep.subr.bf16.mxu0 0
    %645 = vmatpush1.bf16.msra.mxu0 0
    %646 = vmatprep.subr.bf16.mxu0 0
    %647 = vmatpush1.bf16.msra.mxu0 0
    %648 = vmatprep.subr.bf16.mxu0 0
    %649 = vmatpush1.bf16.msra.mxu0 0
    %650 = vmatprep.mubr.bf16.mxu0 0
    %651 = vmatmul.mubr.bf16.gmra.mrb[0].mxu0 %v546
    %v652 = vpop.f32.mrb[0].mxu0
    %v653 = vadd.f32 %v568, %v652
    %v654 = vpop.f32.mrb[0].mxu0
    %v655 = vpop.f32.mrb[0].mxu0
    %v656 = vadd.f32 %v568, %v655
    %v657 = vpop.f32.mrb[0].mxu0
    %658 = vdwg.mxu0
    %v659 = vpack.c.bf16 %v656, %v653
    %v661 = vunpack.c.l.b16 %v659
    %v662 = vunpack.c.h.b16 %v659
    %v663 = vpack.c.b16 %v661, %v661
    %v664 = vpack.c.b16 %v662, %v662
    %667 = vst [vmem:[%s9] sm:$0xf] %v663
    %668 = vst [vmem:[%s9 + $0x4] sm:$0xf] %v664
    // Predicated region
    $region54: #{dqn_forward.1} parent=1 // pred_check
      _
    $region55: #{dqn_forward.1} parent=1 // pred_check_branch
      %670 = sbr.rel (0) target = $region57
    $region56: #{dqn_forward.1} parent=1 // pred_region
      _
    $region57: #{dqn_forward.1} parent=1 // pred_fallthru
      _
    // Predicated region
    $region58: #{dqn_forward.1} parent=1 // pred_check
      _
    $region59: #{dqn_forward.1} parent=1 // pred_check_branch
      %672 = sbr.rel (0) target = $region61
    $region60: #{dqn_forward.1} parent=1 // pred_region
      _
    $region61: #{dqn_forward.1} parent=1 // pred_fallthru
      _
    %673 = vsyncpa [#allocation3], 1
    %674 = vsyncpa [#allocation5], 1
    %675 = vsyncpa [#allocation8], 1

</llo_original>
